<compile_context>
chip_gen: v5e
topology: v5e:2x2
jax: 0.10.0
libtpu: 0.0.40
codegen_flags: <defaults>
</compile_context>

<pallas_src>
import math

import jax
import jax.numpy as jnp
from jax.experimental import pallas as pl
from jax.experimental.pallas import tpu as pltpu


def _make_mlp_kernel(n_layers):
    """Fused MLP kernel body for `n_layers` Linear layers (transposed layout).

    Kernel refs: (z_ref, w0, b0, w1, b1, ..., w_{n-1}, b_{n-1}, o_ref)
      z_ref : (L, tile_n)        — batch on lanes
      w_i   : (out_i, in_i)      — PyTorch-native layout
      b_i   : (out_i, 1)         — broadcasts across lanes
      o_ref : (3, tile_n)
    """

    def kernel(*refs):
        z_ref = refs[0]
        o_ref = refs[-1]
        param_refs = refs[1:-1]

        h = z_ref[...]                                  # (L, tile_n)
        for i in range(n_layers):
            w = param_refs[2 * i][...]                  # (out, in)
            b = param_refs[2 * i + 1][...]              # (out, 1)
            h = jnp.dot(w, h, preferred_element_type=jnp.float32) + b
            if i < n_layers - 1:                        # ReLU except last layer
                h = jnp.maximum(h, 0.0)
        o_ref[...] = h.astype(o_ref.dtype)

    return kernel


def synthesis_transform(z, params, *, tile_n=1024):
    """Apply the SynthesisTransform MLP to z of shape (N, L).

    params: list of (W, b) with W shape (out, in), b shape (out, 1)
            (PyTorch nn.Linear native layout).
    Returns (N, 3).
    """
    N, L = z.shape
    n_layers = len(params)
    out_dim = params[-1][0].shape[0]

    # --- tile sizing: lane-aligned (multiple of 128), capped at padded N,
    # and split so the parallel grid has >= 2 steps when possible (v7x 2xTC).
    n_lane = pl.cdiv(N, 128) * 128
    tile_n = max(128, min(int(tile_n), n_lane))
    tile_n = (tile_n // 128) * 128
    if n_lane // tile_n < 2 and n_lane >= 256:
        tile_n = max(128, ((n_lane // 2) // 128) * 128)
    n_tiles = pl.cdiv(N, tile_n)
    N_pad = n_tiles * tile_n

    # --- transposed, lane-padded input (batch on lanes)
    zt = z.T                                            # (L, N)
    if N_pad != N:
        zt = jnp.pad(zt, ((0, 0), (0, N_pad - N)))

    kernel = _make_mlp_kernel(n_layers)

    # z tiled along the lane/batch axis; params loaded once and kept resident
    # (constant block index => no re-DMA across grid steps).
    in_specs = [pl.BlockSpec((L, tile_n), lambda i: (0, i))]
    flat_args = [zt]
    for (w, b) in params:
        in_specs.append(pl.BlockSpec(w.shape, lambda i: (0, 0)))
        in_specs.append(pl.BlockSpec(b.shape, lambda i: (0, 0)))
        flat_args += [w, b]

    out_spec = pl.BlockSpec((out_dim, tile_n), lambda i: (0, i))

    # --- advisory cost estimate for XLA scheduling
    flops = 2 * N_pad * sum(int(w.shape[0]) * int(w.shape[1]) for (w, _) in params)
    param_bytes = sum(int(w.size) * w.dtype.itemsize + int(b.size) * b.dtype.itemsize
                      for (w, b) in params)
    bytes_accessed = (int(zt.size) * zt.dtype.itemsize
                      + N_pad * out_dim * z.dtype.itemsize
                      + param_bytes)

    out_t = pl.pallas_call(
        kernel,
        out_shape=jax.ShapeDtypeStruct((out_dim, N_pad), z.dtype),
        grid_spec=pltpu.PrefetchScalarGridSpec(
            num_scalar_prefetch=0,
            grid=(n_tiles,),
            in_specs=in_specs,
            out_specs=out_spec,
        ),
        compiler_params=pltpu.CompilerParams(
            dimension_semantics=("parallel",)),
        cost_estimate=pl.CostEstimate(
            flops=flops, transcendentals=0, bytes_accessed=bytes_accessed),
    )(*flat_args)

    # wrapper-side slice + transpose back to (N, 3) — free layout plumbing
    return out_t[:, :N].T


def init_params(key, L, dim_hidden, num_layers):
    """Deterministic synthetic init matching nn.Linear shapes.

    Returns list of (W, b): W in (out, in) layout, b in (out, 1).
    """
    ins = [L] + [dim_hidden] * (num_layers - 1)
    outs = [dim_hidden] * (num_layers - 1) + [3]
    params = []
    for i in range(num_layers):
        key, kw, kb = jax.random.split(key, 3)
        bound = 1.0 / math.sqrt(ins[i])
        w = jax.random.uniform(kw, (outs[i], ins[i]), jnp.float32, -bound, bound)
        b = jax.random.uniform(kb, (outs[i], 1), jnp.float32, -bound, bound)
        params.append((w, b))
    return params


def reference_forward(z, params):
    h = z.astype(jnp.float32)
    n = len(params)
    for i, (w, b) in enumerate(params):
        h = h @ w.T + b.reshape(1, -1)
        if i < n - 1:
            h = jnp.maximum(h, 0.0)
    return h.astype(z.dtype)


if __name__ == "__main__":
    # Small shapes consistent with the module: L=8, dim_hidden=32, num_layers=4.
    # N=300 is intentionally ragged to exercise the lane-padding path; the
    # wrapper splits it into 3 parallel 128-wide lane tiles.
    L, dim_hidden, num_layers = 8, 32, 4
    N = 300

    key = jax.random.PRNGKey(0)
    key, kz = jax.random.split(key)
    z = jax.random.normal(kz, (N, L), jnp.float32)

    params = init_params(key, L, dim_hidden, num_layers)

    out = synthesis_transform(z, params)
    out = jax.block_until_ready(out)

    ref = reference_forward(z, params)
    assert out.shape == (N, 3), out.shape
    assert jnp.allclose(out, ref, atol=1e-5, rtol=1e-5), "mismatch vs reference"

    print("KERNEL_OK")
</pallas_src>

<mosaic_0001>
module attributes {stable_mosaic.version = 11 : i64} {
  func.func @kernel(%arg0: i32, %arg1: memref<8x128xf32, #tpu.memory_space<vmem>>, %arg2: memref<32x8xf32, #tpu.memory_space<vmem>>, %arg3: memref<32x1xf32, #tpu.memory_space<vmem>>, %arg4: memref<32x32xf32, #tpu.memory_space<vmem>>, %arg5: memref<32x1xf32, #tpu.memory_space<vmem>>, %arg6: memref<32x32xf32, #tpu.memory_space<vmem>>, %arg7: memref<32x1xf32, #tpu.memory_space<vmem>>, %arg8: memref<3x32xf32, #tpu.memory_space<vmem>>, %arg9: memref<3x1xf32, #tpu.memory_space<vmem>>, %arg10: memref<3x128xf32, #tpu.memory_space<vmem>>) attributes {dimension_semantics = [#tpu.dimension_semantics<parallel>], iteration_bounds = array<i64: 3>, scalar_prefetch = 0 : i64, scratch_operands = 0 : i64, tpu.core_type = #tpu.core_type<tc>, window_params = [{transform_indices = @transform_0, window_bounds = array<i64: 8, 128>}, {pipeline_mode = #tpu.pipeline_mode<synchronous>, transform_indices = @transform_1, window_bounds = array<i64: 32, 8>}, {pipeline_mode = #tpu.pipeline_mode<synchronous>, transform_indices = @transform_2, window_bounds = array<i64: 32, 1>}, {pipeline_mode = #tpu.pipeline_mode<synchronous>, transform_indices = @transform_3, window_bounds = array<i64: 32, 32>}, {pipeline_mode = #tpu.pipeline_mode<synchronous>, transform_indices = @transform_4, window_bounds = array<i64: 32, 1>}, {pipeline_mode = #tpu.pipeline_mode<synchronous>, transform_indices = @transform_5, window_bounds = array<i64: 32, 32>}, {pipeline_mode = #tpu.pipeline_mode<synchronous>, transform_indices = @transform_6, window_bounds = array<i64: 32, 1>}, {pipeline_mode = #tpu.pipeline_mode<synchronous>, transform_indices = @transform_7, window_bounds = array<i64: 3, 32>}, {pipeline_mode = #tpu.pipeline_mode<synchronous>, transform_indices = @transform_8, window_bounds = array<i64: 3, 1>}, {transform_indices = @transform_9, window_bounds = array<i64: 3, 128>}]} {
    %c0 = arith.constant 0 : index
    %c0_0 = arith.constant 0 : index
    %0 = vector.load %arg1[%c0, %c0_0] : memref<8x128xf32, #tpu.memory_space<vmem>>, vector<8x128xf32>
    %c0_1 = arith.constant 0 : index
    %c0_2 = arith.constant 0 : index
    %1 = vector.load %arg2[%c0_1, %c0_2] : memref<32x8xf32, #tpu.memory_space<vmem>>, vector<32x8xf32>
    %c0_3 = arith.constant 0 : index
    %c0_4 = arith.constant 0 : index
    %2 = vector.load %arg3[%c0_3, %c0_4] : memref<32x1xf32, #tpu.memory_space<vmem>>, vector<32x1xf32>
    %cst = arith.constant dense<0.000000e+00> : vector<32x128xf32>
    %3 = tpu.matmul %1, %0, %cst {dimension_numbers = #tpu.dot_dimension_numbers<[1], [0], [0], [1], [0, 0, 1, 1], [], []>} : vector<32x8xf32>, vector<8x128xf32>, vector<32x128xf32> -> vector<32x128xf32>
    %4 = vector.broadcast %2 : vector<32x1xf32> to vector<32x128xf32>
    %5 = arith.addf %3, %4 : vector<32x128xf32>
    %cst_5 = arith.constant 0.000000e+00 : f32
    %6 = vector.broadcast %cst_5 : f32 to vector<32x128xf32>
    %7 = arith.maximumf %5, %6 : vector<32x128xf32>
    %c0_6 = arith.constant 0 : index
    %c0_7 = arith.constant 0 : index
    %8 = vector.load %arg4[%c0_6, %c0_7] : memref<32x32xf32, #tpu.memory_space<vmem>>, vector<32x32xf32>
    %c0_8 = arith.constant 0 : index
    %c0_9 = arith.constant 0 : index
    %9 = vector.load %arg5[%c0_8, %c0_9] : memref<32x1xf32, #tpu.memory_space<vmem>>, vector<32x1xf32>
    %cst_10 = arith.constant dense<0.000000e+00> : vector<32x128xf32>
    %10 = tpu.matmul %8, %7, %cst_10 {dimension_numbers = #tpu.dot_dimension_numbers<[1], [0], [0], [1], [0, 0, 1, 1], [], []>} : vector<32x32xf32>, vector<32x128xf32>, vector<32x128xf32> -> vector<32x128xf32>
    %11 = vector.broadcast %9 : vector<32x1xf32> to vector<32x128xf32>
    %12 = arith.addf %10, %11 : vector<32x128xf32>
    %cst_11 = arith.constant 0.000000e+00 : f32
    %13 = vector.broadcast %cst_11 : f32 to vector<32x128xf32>
    %14 = arith.maximumf %12, %13 : vector<32x128xf32>
    %c0_12 = arith.constant 0 : index
    %c0_13 = arith.constant 0 : index
    %15 = vector.load %arg6[%c0_12, %c0_13] : memref<32x32xf32, #tpu.memory_space<vmem>>, vector<32x32xf32>
    %c0_14 = arith.constant 0 : index
    %c0_15 = arith.constant 0 : index
    %16 = vector.load %arg7[%c0_14, %c0_15] : memref<32x1xf32, #tpu.memory_space<vmem>>, vector<32x1xf32>
    %cst_16 = arith.constant dense<0.000000e+00> : vector<32x128xf32>
    %17 = tpu.matmul %15, %14, %cst_16 {dimension_numbers = #tpu.dot_dimension_numbers<[1], [0], [0], [1], [0, 0, 1, 1], [], []>} : vector<32x32xf32>, vector<32x128xf32>, vector<32x128xf32> -> vector<32x128xf32>
    %18 = vector.broadcast %16 : vector<32x1xf32> to vector<32x128xf32>
    %19 = arith.addf %17, %18 : vector<32x128xf32>
    %cst_17 = arith.constant 0.000000e+00 : f32
    %20 = vector.broadcast %cst_17 : f32 to vector<32x128xf32>
    %21 = arith.maximumf %19, %20 : vector<32x128xf32>
    %c0_18 = arith.constant 0 : index
    %c0_19 = arith.constant 0 : index
    %22 = vector.load %arg8[%c0_18, %c0_19] : memref<3x32xf32, #tpu.memory_space<vmem>>, vector<3x32xf32>
    %c0_20 = arith.constant 0 : index
    %c0_21 = arith.constant 0 : index
    %23 = vector.load %arg9[%c0_20, %c0_21] : memref<3x1xf32, #tpu.memory_space<vmem>>, vector<3x1xf32>
    %cst_22 = arith.constant dense<0.000000e+00> : vector<3x128xf32>
    %24 = tpu.matmul %22, %21, %cst_22 {dimension_numbers = #tpu.dot_dimension_numbers<[1], [0], [0], [1], [0, 0, 1, 1], [], []>} : vector<3x32xf32>, vector<32x128xf32>, vector<3x128xf32> -> vector<3x128xf32>
    %25 = vector.broadcast %23 : vector<3x1xf32> to vector<3x128xf32>
    %26 = arith.addf %24, %25 : vector<3x128xf32>
    %c0_23 = arith.constant 0 : index
    %c0_24 = arith.constant 0 : index
    %27 = vector.load %arg10[%c0_23, %c0_24] : memref<3x128xf32, #tpu.memory_space<vmem>>, vector<3x128xf32>
    tpu.vector_store %arg10[%c0_23, %c0_24], %26 {strides = array<i32>} : memref<3x128xf32, #tpu.memory_space<vmem>>, vector<3x128xf32>,
    return
  }
  func.func @transform_0(%arg0: i32) -> (i32, i32) {
    %c0_i32 = arith.constant 0 : i32
    %c0_i32_0 = arith.constant 0 : i32
    return %c0_i32, %arg0 : i32, i32
  }
  func.func @transform_1(%arg0: i32) -> (i32, i32) {
    %c0_i32 = arith.constant 0 : i32
    %c0_i32_0 = arith.constant 0 : i32
    %c0_i32_1 = arith.constant 0 : i32
    return %c0_i32, %c0_i32_0 : i32, i32
  }
  func.func @transform_2(%arg0: i32) -> (i32, i32) {
    %c0_i32 = arith.constant 0 : i32
    %c0_i32_0 = arith.constant 0 : i32
    %c0_i32_1 = arith.constant 0 : i32
    return %c0_i32, %c0_i32_0 : i32, i32
  }
  func.func @transform_3(%arg0: i32) -> (i32, i32) {
    %c0_i32 = arith.constant 0 : i32
    %c0_i32_0 = arith.constant 0 : i32
    %c0_i32_1 = arith.constant 0 : i32
    return %c0_i32, %c0_i32_0 : i32, i32
  }
  func.func @transform_4(%arg0: i32) -> (i32, i32) {
    %c0_i32 = arith.constant 0 : i32
    %c0_i32_0 = arith.constant 0 : i32
    %c0_i32_1 = arith.constant 0 : i32
    return %c0_i32, %c0_i32_0 : i32, i32
  }
  func.func @transform_5(%arg0: i32) -> (i32, i32) {
    %c0_i32 = arith.constant 0 : i32
    %c0_i32_0 = arith.constant 0 : i32
    %c0_i32_1 = arith.constant 0 : i32
    return %c0_i32, %c0_i32_0 : i32, i32
  }
  func.func @transform_6(%arg0: i32) -> (i32, i32) {
    %c0_i32 = arith.constant 0 : i32
    %c0_i32_0 = arith.constant 0 : i32
    %c0_i32_1 = arith.constant 0 : i32
    return %c0_i32, %c0_i32_0 : i32, i32
  }
  func.func @transform_7(%arg0: i32) -> (i32, i32) {
    %c0_i32 = arith.constant 0 : i32
    %c0_i32_0 = arith.constant 0 : i32
    %c0_i32_1 = arith.constant 0 : i32
    return %c0_i32, %c0_i32_0 : i32, i32
  }
  func.func @transform_8(%arg0: i32) -> (i32, i32) {
    %c0_i32 = arith.constant 0 : i32
    %c0_i32_0 = arith.constant 0 : i32
    %c0_i32_1 = arith.constant 0 : i32
    return %c0_i32, %c0_i32_0 : i32, i32
  }
  func.func @transform_9(%arg0: i32) -> (i32, i32) {
    %c0_i32 = arith.constant 0 : i32
    %c0_i32_0 = arith.constant 0 : i32
    return %c0_i32, %arg0 : i32, i32
  }
}

</mosaic_0001>

<llo_original>
// kernel: tpu_custom_call.1
$region0: #{tpu_custom_call.1}
  #allocation0 [shape = 'u32[]', space=smem, size = 0x4, offset = 0x4, fixed_abs, tag = 'smem constant byte address 0x4 - core index']
  #allocation1 [shape = 'u32[72,128]{1,0:T(1,128)}', space=vmem, size = 0x9000, scoped, tag = 'internal scratch']
  %s0 = inlined_call_operand.vmem [shape: f32[8,384], index: 0, kind: input, shape index: {}]
  %s1 = inlined_call_operand.vmem [shape: f32[32,8], index: 1, kind: input, shape index: {}]
  %s2 = inlined_call_operand.vmem [shape: f32[32,1], index: 2, kind: input, shape index: {}]
  %s3 = inlined_call_operand.vmem [shape: f32[32,32], index: 3, kind: input, shape index: {}]
  %s4 = inlined_call_operand.vmem [shape: f32[32,1], index: 4, kind: input, shape index: {}]
  %s5 = inlined_call_operand.vmem [shape: f32[32,32], index: 5, kind: input, shape index: {}]
  %s6 = inlined_call_operand.vmem [shape: f32[32,1], index: 6, kind: input, shape index: {}]
  %s7 = inlined_call_operand.vmem [shape: f32[3,32], index: 7, kind: input, shape index: {}]
  %s8 = inlined_call_operand.vmem [shape: f32[3,1], index: 8, kind: input, shape index: {}]
  %s9 = inlined_call_operand.hbm [shape: f32[3,384], index: 9, kind: output, shape index: {}]
  %s10 = sld [smem:[#allocation0]]
  $region69: #{tpu_custom_call.1} parent=0
    _
  %s12 = ssub.s32 1, %s10
  %s13 = scalar_select 0, %s12, %s10
  $region1: #{tpu_custom_call.1} parent=0
    #allocation2 [shape = 'u8[4096]{0}', space=vmem, size = 0x1000, scoped, tag = 'output window, operand 0']
    #allocation3 [shape = 's32[2]{0}', space=sflag, size = 0x8, scoped, tag = 'scoped memory for tpu_custom_call.1']
    %14 = vsyncpa [#allocation3], 0
    %s15 = scalar_lea.sflag [#allocation3], 1
    %16 = vsyncpa %s15, 0
    loop: start=0, step=1, limit=5
    $region2: #{tpu_custom_call.1} parent=1 // loop_pre_header
      _
    $region3: #{tpu_custom_call.1} parent=1 // loop_header
      %s18 = sphi 0, %s22
      %p19 = scmp.ge.s32.totalorder %s18, 5
      %s28 = sphi 0, %s30
      %s31 = sphi 0, %s28
      %s32 = sphi 0, %s31
      %s48 = sphi 0, %s32
      %s52 = sphi 0, %s52
      %s54 = sphi 0, %s52
      %s55 = sphi 0, %s54
      %s69 = sphi 0, %s55
      %s73 = sphi 0, %s73
      %s75 = sphi 0, %s73
      %s76 = sphi 0, %s75
      %s90 = sphi 0, %s76
      %s94 = sphi 0, %s94
      %s96 = sphi 0, %s94
      %s97 = sphi 0, %s96
      %s111 = sphi 0, %s97
      %s115 = sphi 0, %s115
      %s117 = sphi 0, %s115
      %s118 = sphi 0, %s117
      %s132 = sphi 0, %s118
      %s136 = sphi 0, %s136
      %s138 = sphi 0, %s136
      %s139 = sphi 0, %s138
      %s153 = sphi 0, %s139
      %s157 = sphi 0, %s157
      %s159 = sphi 0, %s157
      %s160 = sphi 0, %s159
      %s174 = sphi 0, %s160
      %s178 = sphi 0, %s178
      %s180 = sphi 0, %s178
      %s181 = sphi 0, %s180
      %s195 = sphi 0, %s181
      %s199 = sphi 0, %s199
      %s201 = sphi 0, %s199
      %s202 = sphi 0, %s201
      %s216 = sphi 0, %s202
      %s222 = sphi 0, %s224
      %s225 = sphi 0, %s222
      %s226 = sphi 0, %s225
      %s242 = sphi 0, %s226
    $region4: #{tpu_custom_call.1} parent=1 // loop_header_branch
      %21 = sbr.rel (%p19) target = $region8
    $region5: #{tpu_custom_call.1} parent=1 // loop_body
      %s23 = ssub.s32 %s18, 1
      %s24 = ssub.s32 %s18, 2
      %s25 = sadd.s32 %s18, 1
      %s26 = ssub.s32 %s18, %s25
      %p27 = scmp.eq.s32.totalorder %s26, 0
      %s29 = sadd.s32 %s28, 1
      %s30 = scalar_select %p27, %s28, %s29
      %p33 = pneg %p27
      %p34 = scmp.eq.s32.totalorder %s18, 2
      %p35 = por %p33, %p34
      %p36 = scmp.ne.s32.totalorder %s28, %s31
      %p37 = scmp.eq.s32.totalorder %s18, 0
      %p38 = por %p36, %p37
      %p39 = scmp.ne.s32.totalorder %s28, %s31
      %p40 = scmp.eq.s32.totalorder %s23, 2
      %p41 = por %p39, %p40
      %p42 = scmp.ne.s32.totalorder %s31, %s32
      %p43 = scmp.eq.s32.totalorder %s23, 0
      %p44 = por %p42, %p43
      %p45 = scmp.ne.s32.totalorder %s31, %s32
      %p46 = scmp.eq.s32.totalorder %s24, 2
      %p47 = por %p45, %p46
      %p49 = scmp.ne.s32.totalorder %s32, %s48
      %p50 = scmp.eq.s32.totalorder %s24, 0
      %p51 = por %p49, %p50
      %s53 = sadd.s32 %s52, 1
      %p56 = scmp.eq.s32.totalorder %s18, 2
      %p57 = scmp.ne.s32.totalorder %s52, %s54
      %p58 = scmp.eq.s32.totalorder %s18, 0
      %p59 = por %p57, %p58
      %p60 = scmp.ne.s32.totalorder %s52, %s54
      %p61 = scmp.eq.s32.totalorder %s23, 2
      %p62 = por %p60, %p61
      %p63 = scmp.ne.s32.totalorder %s54, %s55
      %p64 = scmp.eq.s32.totalorder %s23, 0
      %p65 = por %p63, %p64
      %p66 = scmp.ne.s32.totalorder %s54, %s55
      %p67 = scmp.eq.s32.totalorder %s24, 2
      %p68 = por %p66, %p67
      %p70 = scmp.ne.s32.totalorder %s55, %s69
      %p71 = scmp.eq.s32.totalorder %s24, 0
      %p72 = por %p70, %p71
      %s74 = sadd.s32 %s73, 1
      %p77 = scmp.eq.s32.totalorder %s18, 2
      %p78 = scmp.ne.s32.totalorder %s73, %s75
      %p79 = scmp.eq.s32.totalorder %s18, 0
      %p80 = por %p78, %p79
      %p81 = scmp.ne.s32.totalorder %s73, %s75
      %p82 = scmp.eq.s32.totalorder %s23, 2
      %p83 = por %p81, %p82
      %p84 = scmp.ne.s32.totalorder %s75, %s76
      %p85 = scmp.eq.s32.totalorder %s23, 0
      %p86 = por %p84, %p85
      %p87 = scmp.ne.s32.totalorder %s75, %s76
      %p88 = scmp.eq.s32.totalorder %s24, 2
      %p89 = por %p87, %p88
      %p91 = scmp.ne.s32.totalorder %s76, %s90
      %p92 = scmp.eq.s32.totalorder %s24, 0
      %p93 = por %p91, %p92
      %s95 = sadd.s32 %s94, 1
      %p98 = scmp.eq.s32.totalorder %s18, 2
      %p99 = scmp.ne.s32.totalorder %s94, %s96
      %p100 = scmp.eq.s32.totalorder %s18, 0
      %p101 = por %p99, %p100
      %p102 = scmp.ne.s32.totalorder %s94, %s96
      %p103 = scmp.eq.s32.totalorder %s23, 2
      %p104 = por %p102, %p103
      %p105 = scmp.ne.s32.totalorder %s96, %s97
      %p106 = scmp.eq.s32.totalorder %s23, 0
      %p107 = por %p105, %p106
      %p108 = scmp.ne.s32.totalorder %s96, %s97
      %p109 = scmp.eq.s32.totalorder %s24, 2
      %p110 = por %p108, %p109
      %p112 = scmp.ne.s32.totalorder %s97, %s111
      %p113 = scmp.eq.s32.totalorder %s24, 0
      %p114 = por %p112, %p113
      %s116 = sadd.s32 %s115, 1
      %p119 = scmp.eq.s32.totalorder %s18, 2
      %p120 = scmp.ne.s32.totalorder %s115, %s117
      %p121 = scmp.eq.s32.totalorder %s18, 0
      %p122 = por %p120, %p121
      %p123 = scmp.ne.s32.totalorder %s115, %s117
      %p124 = scmp.eq.s32.totalorder %s23, 2
      %p125 = por %p123, %p124
      %p126 = scmp.ne.s32.totalorder %s117, %s118
      %p127 = scmp.eq.s32.totalorder %s23, 0
      %p128 = por %p126, %p127
      %p129 = scmp.ne.s32.totalorder %s117, %s118
      %p130 = scmp.eq.s32.totalorder %s24, 2
      %p131 = por %p129, %p130
      %p133 = scmp.ne.s32.totalorder %s118, %s132
      %p134 = scmp.eq.s32.totalorder %s24, 0
      %p135 = por %p133, %p134
      %s137 = sadd.s32 %s136, 1
      %p140 = scmp.eq.s32.totalorder %s18, 2
      %p141 = scmp.ne.s32.totalorder %s136, %s138
      %p142 = scmp.eq.s32.totalorder %s18, 0
      %p143 = por %p141, %p142
      %p144 = scmp.ne.s32.totalorder %s136, %s138
      %p145 = scmp.eq.s32.totalorder %s23, 2
      %p146 = por %p144, %p145
      %p147 = scmp.ne.s32.totalorder %s138, %s139
      %p148 = scmp.eq.s32.totalorder %s23, 0
      %p149 = por %p147, %p148
      %p150 = scmp.ne.s32.totalorder %s138, %s139
      %p151 = scmp.eq.s32.totalorder %s24, 2
      %p152 = por %p150, %p151
      %p154 = scmp.ne.s32.totalorder %s139, %s153
      %p155 = scmp.eq.s32.totalorder %s24, 0
      %p156 = por %p154, %p155
      %s158 = sadd.s32 %s157, 1
      %p161 = scmp.eq.s32.totalorder %s18, 2
      %p162 = scmp.ne.s32.totalorder %s157, %s159
      %p163 = scmp.eq.s32.totalorder %s18, 0
      %p164 = por %p162, %p163
      %p165 = scmp.ne.s32.totalorder %s157, %s159
      %p166 = scmp.eq.s32.totalorder %s23, 2
      %p167 = por %p165, %p166
      %p168 = scmp.ne.s32.totalorder %s159, %s160
      %p169 = scmp.eq.s32.totalorder %s23, 0
      %p170 = por %p168, %p169
      %p171 = scmp.ne.s32.totalorder %s159, %s160
      %p172 = scmp.eq.s32.totalorder %s24, 2
      %p173 = por %p171, %p172
      %p175 = scmp.ne.s32.totalorder %s160, %s174
      %p176 = scmp.eq.s32.totalorder %s24, 0
      %p177 = por %p175, %p176
      %s179 = sadd.s32 %s178, 1
      %p182 = scmp.eq.s32.totalorder %s18, 2
      %p183 = scmp.ne.s32.totalorder %s178, %s180
      %p184 = scmp.eq.s32.totalorder %s18, 0
      %p185 = por %p183, %p184
      %p186 = scmp.ne.s32.totalorder %s178, %s180
      %p187 = scmp.eq.s32.totalorder %s23, 2
      %p188 = por %p186, %p187
      %p189 = scmp.ne.s32.totalorder %s180, %s181
      %p190 = scmp.eq.s32.totalorder %s23, 0
      %p191 = por %p189, %p190
      %p192 = scmp.ne.s32.totalorder %s180, %s181
      %p193 = scmp.eq.s32.totalorder %s24, 2
      %p194 = por %p192, %p193
      %p196 = scmp.ne.s32.totalorder %s181, %s195
      %p197 = scmp.eq.s32.totalorder %s24, 0
      %p198 = por %p196, %p197
      %s200 = sadd.s32 %s199, 1
      %p203 = scmp.eq.s32.totalorder %s18, 2
      %p204 = scmp.ne.s32.totalorder %s199, %s201
      %p205 = scmp.eq.s32.totalorder %s18, 0
      %p206 = por %p204, %p205
      %p207 = scmp.ne.s32.totalorder %s199, %s201
      %p208 = scmp.eq.s32.totalorder %s23, 2
      %p209 = por %p207, %p208
      %p210 = scmp.ne.s32.totalorder %s201, %s202
      %p211 = scmp.eq.s32.totalorder %s23, 0
      %p212 = por %p210, %p211
      %p213 = scmp.ne.s32.totalorder %s201, %s202
      %p214 = scmp.eq.s32.totalorder %s24, 2
      %p215 = por %p213, %p214
      %p217 = scmp.ne.s32.totalorder %s202, %s216
      %p218 = scmp.eq.s32.totalorder %s24, 0
      %p219 = por %p217, %p218
      %s220 = ssub.s32 %s18, %s25
      %p221 = scmp.eq.s32.totalorder %s220, 0
      %s223 = sadd.s32 %s222, 1
      %s224 = scalar_select %p221, %s222, %s223
      %p227 = pneg %p221
      %p228 = scmp.eq.s32.totalorder %s18, 2
      %p229 = por %p227, %p228
      %p230 = scmp.ne.s32.totalorder %s222, %s225
      %p231 = scmp.eq.s32.totalorder %s18, 0
      %p232 = por %p230, %p231
      %p233 = scmp.ne.s32.totalorder %s222, %s225
      %p234 = scmp.eq.s32.totalorder %s23, 2
      %p235 = por %p233, %p234
      %p236 = scmp.ne.s32.totalorder %s225, %s226
      %p237 = scmp.eq.s32.totalorder %s23, 0
      %p238 = por %p236, %p237
      %p239 = scmp.ne.s32.totalorder %s225, %s226
      %p240 = scmp.eq.s32.totalorder %s24, 2
      %p241 = por %p239, %p240
      %p243 = scmp.ne.s32.totalorder %s226, %s242
      %p244 = scmp.eq.s32.totalorder %s24, 0
      %p245 = por %p243, %p244
      %p246 = scmp.le.s32.totalorder 1, %s18
      %p247 = scmp.lt.s32.totalorder %s18, 4
      %p248 = pnand %p246, %p247
      %p249 = pneg %p248
      // Predicated region
      $region9: #{tpu_custom_call.1} parent=5 // pred_check
        _
      $region10: #{tpu_custom_call.1} parent=5 // pred_check_branch
        %251 = sbr.rel (%p248) target = $region12
      $region11: #{tpu_custom_call.1} parent=5 // pred_region
        %s252 = ssub.s32 %s18, 1
        // Predicated region
        $region13: #{tpu_custom_call.1} parent=11 // pred_check
          %p253 = pneg %p65
        $region14: #{tpu_custom_call.1} parent=11 // pred_check_branch
          %255 = sbr.rel (%p253) target = $region16
        $region15: #{tpu_custom_call.1} parent=11 // pred_region
          _
        $region16: #{tpu_custom_call.1} parent=11 // pred_fallthru
          _
        // Predicated region
        $region17: #{tpu_custom_call.1} parent=11 // pred_check
          %p256 = pneg %p86
        $region18: #{tpu_custom_call.1} parent=11 // pred_check_branch
          %258 = sbr.rel (%p256) target = $region20
        $region19: #{tpu_custom_call.1} parent=11 // pred_region
          _
        $region20: #{tpu_custom_call.1} parent=11 // pred_fallthru
          _
        // Predicated region
        $region21: #{tpu_custom_call.1} parent=11 // pred_check
          %p259 = pneg %p107
        $region22: #{tpu_custom_call.1} parent=11 // pred_check_branch
          %261 = sbr.rel (%p259) target = $region24
        $region23: #{tpu_custom_call.1} parent=11 // pred_region
          _
        $region24: #{tpu_custom_call.1} parent=11 // pred_fallthru
          _
        // Predicated region
        $region25: #{tpu_custom_call.1} parent=11 // pred_check
          %p262 = pneg %p128
        $region26: #{tpu_custom_call.1} parent=11 // pred_check_branch
          %264 = sbr.rel (%p262) target = $region28
        $region27: #{tpu_custom_call.1} parent=11 // pred_region
          _
        $region28: #{tpu_custom_call.1} parent=11 // pred_fallthru
          _
        // Predicated region
        $region29: #{tpu_custom_call.1} parent=11 // pred_check
          %p265 = pneg %p149
        $region30: #{tpu_custom_call.1} parent=11 // pred_check_branch
          %267 = sbr.rel (%p265) target = $region32
        $region31: #{tpu_custom_call.1} parent=11 // pred_region
          _
        $region32: #{tpu_custom_call.1} parent=11 // pred_fallthru
          _
        // Predicated region
        $region33: #{tpu_custom_call.1} parent=11 // pred_check
          %p268 = pneg %p170
        $region34: #{tpu_custom_call.1} parent=11 // pred_check_branch
          %270 = sbr.rel (%p268) target = $region36
        $region35: #{tpu_custom_call.1} parent=11 // pred_region
          _
        $region36: #{tpu_custom_call.1} parent=11 // pred_fallthru
          _
        // Predicated region
        $region37: #{tpu_custom_call.1} parent=11 // pred_check
          %p271 = pneg %p191
        $region38: #{tpu_custom_call.1} parent=11 // pred_check_branch
          %273 = sbr.rel (%p271) target = $region40
        $region39: #{tpu_custom_call.1} parent=11 // pred_region
          _
        $region40: #{tpu_custom_call.1} parent=11 // pred_fallthru
          _
        // Predicated region
        $region41: #{tpu_custom_call.1} parent=11 // pred_check
          %p274 = pneg %p212
        $region42: #{tpu_custom_call.1} parent=11 // pred_check_branch
          %276 = sbr.rel (%p274) target = $region44
        $region43: #{tpu_custom_call.1} parent=11 // pred_region
          _
        $region44: #{tpu_custom_call.1} parent=11 // pred_fallthru
          _
      $region12: #{tpu_custom_call.1} parent=5 // pred_fallthru
        _
      %p277 = scmp.lt.s32.totalorder %s18, 3
      // Predicated region
      $region45: #{tpu_custom_call.1} parent=5 // pred_check
        %p278 = pneg %p277
      $region46: #{tpu_custom_call.1} parent=5 // pred_check_branch
        %280 = sbr.rel (%p278) target = $region48
      $region47: #{tpu_custom_call.1} parent=5 // pred_region
        // Predicated region
        $region49: #{tpu_custom_call.1} parent=47 // pred_check
          %p281 = pneg %p38
        $region50: #{tpu_custom_call.1} parent=47 // pred_check_branch
          %283 = sbr.rel (%p281) target = $region52
        $region51: #{tpu_custom_call.1} parent=47 // pred_region
          %p284 = scmp.lt.s32.totalorder %s18, 2
          %s285 = scalar_select %p284, %s18, 2
          %s286 = smul.addr %s285, 8
          %s287 = scalar_lea.vmem %s0, %s286
        $region52: #{tpu_custom_call.1} parent=47 // pred_fallthru
          _
      $region48: #{tpu_custom_call.1} parent=5 // pred_fallthru
        _
      %p288 = scmp.le.s32.totalorder 1, %s18
      %p289 = scmp.lt.s32.totalorder %s18, 4
      %p290 = pnand %p288, %p289
      %p291 = pneg %p290
      // Predicated region
      $region53: #{tpu_custom_call.1} parent=5 // pred_check
        _
      $region54: #{tpu_custom_call.1} parent=5 // pred_check_branch
        %293 = sbr.rel (%p290) target = $region56
      $region55: #{tpu_custom_call.1} parent=5 // pred_region
        %s294 = ssub.s32 %s18, 1
        %p295 = scmp.lt.s32.totalorder %s23, 2
        %s296 = scalar_select %p295, %s23, 2
        %s297 = smul.addr %s296, 8
        %s298 = scalar_lea.vmem %s0, %s297
        %p299 = pneg %p44
        %p300 = pneg %p41
        %p301 = pneg %p65
        %p302 = pneg %p62
        %p303 = pneg %p86
        %p304 = pneg %p83
        %p305 = pneg %p107
        %p306 = pneg %p104
        %p307 = pneg %p128
        %p308 = pneg %p125
        %p309 = pneg %p149
        %p310 = pneg %p146
        %p311 = pneg %p170
        %p312 = pneg %p167
        %p313 = pneg %p191
        %p314 = pneg %p188
        %p315 = pneg %p212
        %p316 = pneg %p209
        %p317 = pneg %p238
        %p318 = pneg %p235
        %s319 = sand.u32 %s225, 1
        %s320 = scalar_lea.sflag [#allocation3], %s319
        %s321 = sand.u32 %s225, 1
        %s322 = smul.addr %s321, 4
        %s323 = scalar_lea.vmem [#allocation2], %s322
        %p324 = scmp.lt.s32.totalorder %s23, 2
        %s325 = scalar_select %p324, %s23, 2
        %s326 = smul.addr %s325, 8
        %s327 = scalar_lea.vmem %s0, %s326
        %v328 = vld [vmem:[%s327] sm:$0xff]
        %v329 = vld [vmem:[%s1] sm:$0xff]
        %v330 = vld [vmem:[%s1 + $0x8] sm:$0xff]
        %v331 = vld [vmem:[%s1 + $0x10] sm:$0xff]
        %v332 = vld [vmem:[%s1 + $0x18] sm:$0xff]
        %v333 = vld [vmem:[%s2] sm:$0xff]
        %v334 = vld [vmem:[%s2 + $0x8] sm:$0xff]
        %v335 = vld [vmem:[%s2 + $0x10] sm:$0xff]
        %v336 = vld [vmem:[%s2 + $0x18] sm:$0xff]
        %338 = vset.pattern.permute.xlu0 0
        %339 = vperm.xlu0 %338, %v333
        %v340 = vpop.permute.xlu0 %339
        %343 = vset.pattern.permute.xlu0 0
        %344 = vperm.xlu0 %343, %v334
        %v345 = vpop.permute.xlu0 %344
        %348 = vset.pattern.permute.xlu0 0
        %349 = vperm.xlu0 %348, %v335
        %v350 = vpop.permute.xlu0 %349
        %353 = vset.pattern.permute.xlu0 0
        %354 = vperm.xlu0 %353, %v336
        %v355 = vpop.permute.xlu0 %354
        %vm357 = vcmask 64512
        %v359 = vsel %vm357, %v329, 0
        %v362 = vsel %vm357, %v330, 0
        %v365 = vsel %vm357, %v331, 0
        %v368 = vsel %vm357, %v332, 0
        %370 = vmatpush.msra.mxu0 0.0
        %371 = vmatpush.msra.mxu0 0.0
        %372 = vmatpush.msra.mxu0 0.0
        %373 = vmatpush.msra.mxu0 0.0
        %374 = vmatpush.msra.mxu0 0.0
        %375 = vmatpush.msra.mxu0 0.0
        %376 = vmatpush.msra.mxu0 0.0
        %377 = vmatpush.msra.mxu0 0.0
        %378 = vmatpush.msra.mxu0 0.0
        %379 = vmatpush.msra.mxu0 0.0
        %380 = vmatpush.msra.mxu0 0.0
        %381 = vmatpush.msra.mxu0 0.0
        %382 = vmatpush.msra.mxu0 0.0
        %383 = vmatpush.msra.mxu0 0.0
        %384 = vmatpush.msra.mxu0 0.0
        %385 = vmatpush.msra.mxu0 %v328
        %386 = vmatmul.f32.gmra.mxu0 %v359
        %v387 = vpop.f32.mrf.mxu0
        %v388 = vadd.f32 %v340, %v387
        %389 = vmatmul.f32.gmra.mxu0 %v362
        %v390 = vpop.f32.mrf.mxu0
        %v391 = vadd.f32 %v345, %v390
        %392 = vmatmul.f32.gmra.mxu0 %v365
        %v393 = vpop.f32.mrf.mxu0
        %v394 = vadd.f32 %v350, %v393
        %395 = vmatmul.f32.gmra.mxu0 %v368
        %v396 = vpop.f32.mrf.mxu0
        %v397 = vadd.f32 %v355, %v396
        %398 = vdwg.mxu0
        %v399 = vmax.f32 %v388, 0.0
        %v400 = vmax.f32 %v391, 0.0
        %v401 = vmax.f32 %v394, 0.0
        %v402 = vmax.f32 %v397, 0.0
        %v403 = vld [vmem:[%s3] sm:$0xff]
        %v404 = vld [vmem:[%s3 + $0x8] sm:$0xff]
        %v405 = vld [vmem:[%s3 + $0x10] sm:$0xff]
        %v406 = vld [vmem:[%s3 + $0x18] sm:$0xff]
        %v407 = vld [vmem:[%s4] sm:$0xff]
        %v408 = vld [vmem:[%s4 + $0x8] sm:$0xff]
        %v409 = vld [vmem:[%s4 + $0x10] sm:$0xff]
        %v410 = vld [vmem:[%s4 + $0x18] sm:$0xff]
        %412 = vset.pattern.permute.xlu0 0
        %413 = vperm.xlu0 %412, %v407
        %v414 = vpop.permute.xlu0 %413
        %417 = vset.pattern.permute.xlu0 0
        %418 = vperm.xlu0 %417, %v408
        %v419 = vpop.permute.xlu0 %418
        %422 = vset.pattern.permute.xlu0 0
        %423 = vperm.xlu0 %422, %v409
        %v424 = vpop.permute.xlu0 %423
        %427 = vset.pattern.permute.xlu0 0
        %428 = vperm.xlu0 %427, %v410
        %v429 = vpop.permute.xlu0 %428
        %vm431 = vcmask 261120
        %v433 = vsel %vm431, %v403, 0
        %v436 = vsel %vm431, %v404, 0
        %v439 = vsel %vm431, %v405, 0
        %v442 = vsel %vm431, %v406, 0
        %444 = vmatpush.msra.mxu0 0.0
        %445 = vmatpush.msra.mxu0 0.0
        %446 = vmatpush.msra.mxu0 0.0
        %447 = vmatpush.msra.mxu0 0.0
        %448 = vmatpush.msra.mxu0 0.0
        %449 = vmatpush.msra.mxu0 0.0
        %450 = vmatpush.msra.mxu0 0.0
        %451 = vmatpush.msra.mxu0 0.0
        %452 = vmatpush.msra.mxu0 0.0
        %453 = vmatpush.msra.mxu0 0.0
        %454 = vmatpush.msra.mxu0 0.0
        %455 = vmatpush.msra.mxu0 0.0
        %456 = vmatpush.msra.mxu0 %v402
        %457 = vmatpush.msra.mxu0 %v401
        %458 = vmatpush.msra.mxu0 %v400
        %459 = vmatpush.msra.mxu0 %v399
        %460 = vmatmul.f32.gmra.mxu0 %v433
        %v461 = vpop.f32.mrf.mxu0
        %v462 = vadd.f32 %v414, %v461
        %463 = vmatmul.f32.gmra.mxu0 %v436
        %v464 = vpop.f32.mrf.mxu0
        %v465 = vadd.f32 %v419, %v464
        %466 = vmatmul.f32.gmra.mxu0 %v439
        %v467 = vpop.f32.mrf.mxu0
        %v468 = vadd.f32 %v424, %v467
        %469 = vmatmul.f32.gmra.mxu0 %v442
        %v470 = vpop.f32.mrf.mxu0
        %v471 = vadd.f32 %v429, %v470
        %472 = vdwg.mxu0
        %v473 = vmax.f32 %v462, 0.0
        %v474 = vmax.f32 %v465, 0.0
        %v475 = vmax.f32 %v468, 0.0
        %v476 = vmax.f32 %v471, 0.0
        %v477 = vld [vmem:[%s5] sm:$0xff]
        %v478 = vld [vmem:[%s5 + $0x8] sm:$0xff]
        %v479 = vld [vmem:[%s5 + $0x10] sm:$0xff]
        %v480 = vld [vmem:[%s5 + $0x18] sm:$0xff]
        %v481 = vld [vmem:[%s6] sm:$0xff]
        %v482 = vld [vmem:[%s6 + $0x8] sm:$0xff]
        %v483 = vld [vmem:[%s6 + $0x10] sm:$0xff]
        %v484 = vld [vmem:[%s6 + $0x18] sm:$0xff]
        %486 = vset.pattern.permute.xlu0 0
        %487 = vperm.xlu0 %486, %v481
        %v488 = vpop.permute.xlu0 %487
        %491 = vset.pattern.permute.xlu0 0
        %492 = vperm.xlu0 %491, %v482
        %v493 = vpop.permute.xlu0 %492
        %496 = vset.pattern.permute.xlu0 0
        %497 = vperm.xlu0 %496, %v483
        %v498 = vpop.permute.xlu0 %497
        %501 = vset.pattern.permute.xlu0 0
        %502 = vperm.xlu0 %501, %v484
        %v503 = vpop.permute.xlu0 %502
        %v506 = vsel %vm431, %v477, 0
        %v509 = vsel %vm431, %v478, 0
        %v512 = vsel %vm431, %v479, 0
        %v515 = vsel %vm431, %v480, 0
        %517 = vmatpush.msra.mxu0 0.0
        %518 = vmatpush.msra.mxu0 0.0
        %519 = vmatpush.msra.mxu0 0.0
        %520 = vmatpush.msra.mxu0 0.0
        %521 = vmatpush.msra.mxu0 0.0
        %522 = vmatpush.msra.mxu0 0.0
        %523 = vmatpush.msra.mxu0 0.0
        %524 = vmatpush.msra.mxu0 0.0
        %525 = vmatpush.msra.mxu0 0.0
        %526 = vmatpush.msra.mxu0 0.0
        %527 = vmatpush.msra.mxu0 0.0
        %528 = vmatpush.msra.mxu0 0.0
        %529 = vmatpush.msra.mxu0 %v476
        %530 = vmatpush.msra.mxu0 %v475
        %531 = vmatpush.msra.mxu0 %v474
        %532 = vmatpush.msra.mxu0 %v473
        %533 = vmatmul.f32.gmra.mxu0 %v506
        %v534 = vpop.f32.mrf.mxu0
        %v535 = vadd.f32 %v488, %v534
        %536 = vmatmul.f32.gmra.mxu0 %v509
        %v537 = vpop.f32.mrf.mxu0
        %v538 = vadd.f32 %v493, %v537
        %539 = vmatmul.f32.gmra.mxu0 %v512
        %v540 = vpop.f32.mrf.mxu0
        %v541 = vadd.f32 %v498, %v540
        %542 = vmatmul.f32.gmra.mxu0 %v515
        %v543 = vpop.f32.mrf.mxu0
        %v544 = vadd.f32 %v503, %v543
        %545 = vdwg.mxu0
        %v546 = vmax.f32 %v535, 0.0
        %v547 = vmax.f32 %v538, 0.0
        %v548 = vmax.f32 %v541, 0.0
        %v549 = vmax.f32 %v544, 0.0
        %v550 = vld [vmem:[%s7] sm:$0x7]
        %v551 = vld [vmem:[%s8] sm:$0x7]
        %553 = vset.pattern.permute.xlu0 0
        %554 = vperm.xlu0 %553, %v551
        %v555 = vpop.permute.xlu0 %554
        %v558 = vsel %vm431, %v550, 0
        %560 = vmatpush.msra.mxu0 0.0
        %561 = vmatpush.msra.mxu0 0.0
        %562 = vmatpush.msra.mxu0 0.0
        %563 = vmatpush.msra.mxu0 0.0
        %564 = vmatpush.msra.mxu0 0.0
        %565 = vmatpush.msra.mxu0 0.0
        %566 = vmatpush.msra.mxu0 0.0
        %567 = vmatpush.msra.mxu0 0.0
        %568 = vmatpush.msra.mxu0 0.0
        %569 = vmatpush.msra.mxu0 0.0
        %570 = vmatpush.msra.mxu0 0.0
        %571 = vmatpush.msra.mxu0 0.0
        %572 = vmatpush.msra.mxu0 %v549
        %573 = vmatpush.msra.mxu0 %v548
        %574 = vmatpush.msra.mxu0 %v547
        %575 = vmatpush.msra.mxu0 %v546
        %576 = vmatmul.f32.gmra.mxu0 %v558
        %v577 = vpop.f32.mrf.mxu0
        %v578 = vadd.f32 %v555, %v577
        %579 = vdwg.mxu0
        %580 = vst [vmem:[%s323] sm:$0x7] %v578
        %s581 = sand.u32 %s225, 1
        %s582 = scalar_lea.sflag [#allocation3], %s581
        %s583 = sand.u32 %s225, 1
        %s584 = smul.addr %s583, 4
        %s585 = scalar_lea.vmem [#allocation2], %s584
        // Predicated region
        $region57: #{tpu_custom_call.1} parent=55 // pred_check
          %p586 = pneg %p235
        $region58: #{tpu_custom_call.1} parent=55 // pred_check_branch
          %588 = sbr.rel (%p586) target = $region60
        $region59: #{tpu_custom_call.1} parent=55 // pred_region
          %590 = vsyncadd %s582, 0
          %s591 = smul.addr %s23, 4
          %s592 = scalar_lea.hbm %s9, %s591
          %s594 = sshll.u32 %s585, 4
          %s595 = int_to_ptr.vmem [resolvable:$true] %s594
          %s596 = sshll.u32 %s592, 4
          %s597 = int_to_ptr.hbm [resolvable:$true] %s596
          %599 = dma.vmem_to_hbm [thread:$0]  %s595, 64, %s597, %s582
        $region60: #{tpu_custom_call.1} parent=55 // pred_fallthru
          _
      $region56: #{tpu_custom_call.1} parent=5 // pred_fallthru
        _
      %p600 = scmp.le.s32.totalorder 2, %s18
      // Predicated region
      $region61: #{tpu_custom_call.1} parent=5 // pred_check
        %p601 = pneg %p600
      $region62: #{tpu_custom_call.1} parent=5 // pred_check_branch
        %603 = sbr.rel (%p601) target = $region64
      $region63: #{tpu_custom_call.1} parent=5 // pred_region
        %s604 = ssub.s32 %s18, 2
        // Predicated region
        $region65: #{tpu_custom_call.1} parent=63 // pred_check
          %p605 = pneg %p241
        $region66: #{tpu_custom_call.1} parent=63 // pred_check_branch
          %607 = sbr.rel (%p605) target = $region68
        $region67: #{tpu_custom_call.1} parent=63 // pred_region
          %s608 = sand.u32 %s226, 1
          %s609 = scalar_lea.sflag [#allocation3], %s608
          %s610 = sand.u32 %s226, 1
          %s611 = smul.addr %s610, 4
          %s612 = scalar_lea.vmem [#allocation2], %s611
          %614 = dma.done %s609, 64
        $region68: #{tpu_custom_call.1} parent=63 // pred_fallthru
          _
      $region64: #{tpu_custom_call.1} parent=5 // pred_fallthru
        _
    $region6: #{tpu_custom_call.1} parent=1 // loop_footer
      %s22 = sadd.s32 1, %s18
    $region7: #{tpu_custom_call.1} parent=1 // loop_footer_branch
      %17 = sbr.rel target = $region3
    $region8: #{tpu_custom_call.1} parent=1 // loop_exit
      _
    %615 = vsyncpa [#allocation3], 1
    %s616 = scalar_lea.sflag [#allocation3], 1
    %617 = vsyncpa %s616, 1

</llo_original>
